<compile_context>
chip_gen: v5e
topology: v5e:2x2
jax: 0.10.0
libtpu: 0.0.40
codegen_flags: <defaults>
</compile_context>

<pallas_src>
import functools

import jax
import jax.numpy as jnp
from jax.experimental import pallas as pl
from jax.experimental.pallas import tpu as pltpu

HIDDEN = 128
VA_HID = 64


def _round_up(n, m):
    return ((n + m - 1) // m) * m


# ----------------------------------------------------------------------------
# Kernel
# ----------------------------------------------------------------------------
def dueling_dqn_kernel(x_ref, w1_ref, wres_ref, wh1_ref, wq_ref, b_ref, out_ref):
    f32 = jnp.float32
    bf16 = jnp.bfloat16

    x = x_ref[...]                                   # (TB, obs) bf16

    b1 = b_ref[0:1, :]
    r1ba = b_ref[1:2, :]
    r2ba = b_ref[2:3, :]                             # includes folded r1bb term
    bh1 = b_ref[3:4, :]                              # includes folded r1bb+r2bb term
    bq = b_ref[4:5, :]                               # folded dueling bias

    # feature = ReLU(x @ W1 + b1)
    f = jnp.maximum(
        jnp.dot(x, w1_ref[...], preferred_element_type=f32) + b1, 0.0)

    # ResidualBlock 1: f + Linear(ReLU(Linear(f)))   (outer bias folded forward)
    h = jnp.maximum(
        jnp.dot(f.astype(bf16), wres_ref[0], preferred_element_type=f32) + r1ba, 0.0)
    f = f + jnp.dot(h.astype(bf16), wres_ref[1], preferred_element_type=f32)

    # ResidualBlock 2                                 (outer bias folded forward)
    h = jnp.maximum(
        jnp.dot(f.astype(bf16), wres_ref[2], preferred_element_type=f32) + r2ba, 0.0)
    f = f + jnp.dot(h.astype(bf16), wres_ref[3], preferred_element_type=f32)

    # Fused heads, stage 1: [value_hidden | advantage_hidden]
    g = jnp.maximum(
        jnp.dot(f.astype(bf16), wh1_ref[...], preferred_element_type=f32) + bh1, 0.0)

    # Fused heads, stage 2 with dueling combine folded into W_q:
    #   cols 0..A-1 hold q = value + advantage - mean(advantage); rest are zero.
    q = jnp.dot(g.astype(bf16), wq_ref[...], preferred_element_type=f32) + bq
    out_ref[...] = q.astype(out_ref.dtype)


# ----------------------------------------------------------------------------
# Param fusion (call once per parameter update, not per forward)
# ----------------------------------------------------------------------------
def fuse_params(params, action_space):
    assert action_space <= HIDDEN, "action_space must be <= 128"
    bf16 = jnp.bfloat16
    f32 = jnp.float32
    A = action_space

    def rt(w):  # bf16 round-trip: the weight values the MXU will actually see
        return w.astype(bf16).astype(f32)

    w1 = params["w1"].astype(bf16)                                     # (obs, 128)
    w_res = jnp.stack(
        [params["r1wa"], params["r1wb"], params["r2wa"], params["r2wb"]]
    ).astype(bf16)                                                     # (4, 128, 128)

    wh1_f32 = jnp.concatenate([params["wv1"], params["wa1"]], axis=1)  # (128, 128)
    w_h1 = wh1_f32.astype(bf16)

    # Dueling combine folded into stage-2 weights:
    #   q = g_v @ broadcast(wv2) + g_a @ (wa2 - mean_cols(wa2)) + (bv2 + ba2 - mean(ba2))
    wq_top = jnp.broadcast_to(params["wv2"], (VA_HID, A))              # value rows
    wq_bot = params["wa2"] - params["wa2"].mean(axis=1, keepdims=True)  # advantage rows
    w_q = jnp.zeros((HIDDEN, HIDDEN), f32)
    w_q = w_q.at[:VA_HID, :A].set(wq_top)
    w_q = w_q.at[VA_HID:, :A].set(wq_bot)
    w_q = w_q.astype(bf16)                                             # (128, 128)

    b_q = jnp.zeros((1, HIDDEN), f32)
    b_q = b_q.at[:, :A].set(
        params["bv2"] + params["ba2"] - params["ba2"].mean(axis=1, keepdims=True))

    # Residual-block outer biases folded forward (f only feeds the heads after
    # block 2, so this is exact up to existing bf16 weight rounding):
    #   r2ba' = r2ba + r1bb @ r2wa ;  bh1' = bh1 + (r1bb + r2bb) @ wh1
    r2ba = params["r2ba"] + params["r1bb"] @ rt(params["r2wa"])
    bh1 = (jnp.concatenate([params["bv1"], params["ba1"]], axis=1)
           + (params["r1bb"] + params["r2bb"]) @ rt(wh1_f32))

    biases = jnp.concatenate(
        [params["b1"], params["r1ba"], r2ba, bh1, b_q,
         jnp.zeros((3, HIDDEN), f32)], axis=0)                         # (8, 128) f32
    return w1, w_res, w_h1, w_q, biases


# ----------------------------------------------------------------------------
# Wrapper
# ----------------------------------------------------------------------------
def dueling_dqn_forward(x, fused, *, action_space, block_b=2048,
                        out_dtype=jnp.bfloat16):
    """Forward pass. `fused` is the output of fuse_params (computed once)."""
    w1, w_res, w_h1, w_q, biases = fused
    B, obs = x.shape

    # Batch tile: as big as block_b, but keep >= 2 grid steps when B allows it
    # so v7x's two TensorCores both get work; multiple of 16 for bf16 tiling.
    half = (B + 1) // 2
    TB = max(16, min(_round_up(block_b, 16), _round_up(half, 16)))
    B_pad = _round_up(B, TB)
    n_blk = B_pad // TB

    x = x.astype(jnp.bfloat16)
    if B_pad != B:
        x = jnp.pad(x, ((0, B_pad - B), (0, 0)))

    flops = 2 * B_pad * (obs * HIDDEN + 6 * HIDDEN * HIDDEN)
    bytes_accessed = (B_pad * obs * 2                      # x (bf16)
                      + (w1.size + w_res.size + w_h1.size + w_q.size) * 2
                      + biases.size * 4
                      + B_pad * HIDDEN * jnp.dtype(out_dtype).itemsize)

    out = pl.pallas_call(
        dueling_dqn_kernel,
        out_shape=jax.ShapeDtypeStruct((B_pad, HIDDEN), out_dtype),
        grid=(n_blk,),
        in_specs=[
            pl.BlockSpec((TB, obs), lambda i: (i, 0)),              # x: tiled over batch
            pl.BlockSpec((obs, HIDDEN), lambda i: (0, 0)),          # weights: resident
            pl.BlockSpec((4, HIDDEN, HIDDEN), lambda i: (0, 0, 0)),
            pl.BlockSpec((HIDDEN, HIDDEN), lambda i: (0, 0)),
            pl.BlockSpec((HIDDEN, HIDDEN), lambda i: (0, 0)),
            pl.BlockSpec((8, HIDDEN), lambda i: (0, 0)),
        ],
        out_specs=pl.BlockSpec((TB, HIDDEN), lambda i: (i, 0)),     # lane-dense output
        compiler_params=pltpu.CompilerParams(
            dimension_semantics=("parallel",)),
        cost_estimate=pl.CostEstimate(flops=int(flops), transcendentals=0,
                                      bytes_accessed=int(bytes_accessed)),
    )(x, w1, w_res, w_h1, w_q, biases)

    return out[:B, :action_space]                                   # (B, A)


# ----------------------------------------------------------------------------
# Synthetic params + pure-JAX reference
# ----------------------------------------------------------------------------
def init_params(key, obs_size, action_space):
    def linear(k, fan_in, fan_out):
        kw, kb = jax.random.split(k)
        scale = 1.0 / jnp.sqrt(fan_in)
        w = jax.random.uniform(kw, (fan_in, fan_out), jnp.float32, -scale, scale)
        b = jax.random.uniform(kb, (1, fan_out), jnp.float32, -scale, scale)
        return w, b

    keys = jax.random.split(key, 9)
    p = {}
    p["w1"], p["b1"] = linear(keys[0], obs_size, HIDDEN)
    p["r1wa"], p["r1ba"] = linear(keys[1], HIDDEN, HIDDEN)
    p["r1wb"], p["r1bb"] = linear(keys[2], HIDDEN, HIDDEN)
    p["r2wa"], p["r2ba"] = linear(keys[3], HIDDEN, HIDDEN)
    p["r2wb"], p["r2bb"] = linear(keys[4], HIDDEN, HIDDEN)
    p["wv1"], p["bv1"] = linear(keys[5], HIDDEN, VA_HID)
    p["wv2"], p["bv2"] = linear(keys[6], VA_HID, 1)
    p["wa1"], p["ba1"] = linear(keys[7], HIDDEN, VA_HID)
    p["wa2"], p["ba2"] = linear(keys[8], VA_HID, action_space)
    return p


def reference_forward(x, p, dot_dtype=jnp.float32):
    """Pure-JAX reference of the PyTorch forward (dot_dtype = MXU operand precision)."""
    def mm(a, w):
        return jnp.dot(a.astype(dot_dtype), w.astype(dot_dtype),
                       preferred_element_type=jnp.float32)

    f = jnp.maximum(mm(x, p["w1"]) + p["b1"], 0.0)
    h = jnp.maximum(mm(f, p["r1wa"]) + p["r1ba"], 0.0)
    f = f + mm(h, p["r1wb"]) + p["r1bb"]
    h = jnp.maximum(mm(f, p["r2wa"]) + p["r2ba"], 0.0)
    f = f + mm(h, p["r2wb"]) + p["r2bb"]
    v = mm(jnp.maximum(mm(f, p["wv1"]) + p["bv1"], 0.0), p["wv2"]) + p["bv2"]
    a = mm(jnp.maximum(mm(f, p["wa1"]) + p["ba1"], 0.0), p["wa2"]) + p["ba2"]
    return v + a - a.mean(axis=1, keepdims=True)


if __name__ == "__main__":
    obs_size = 16
    action_space = 6
    batch = 100   # not a tile multiple -> exercises padding + a 2-step grid

    key = jax.random.PRNGKey(0)
    kx, kp = jax.random.split(key)
    x = jax.random.normal(kx, (batch, obs_size), jnp.float32)
    params = init_params(kp, obs_size, action_space)

    # Hoisted param fusion: compute once, reuse across forward calls.
    fused = fuse_params(params, action_space)

    forward = jax.jit(functools.partial(dueling_dqn_forward,
                                        action_space=action_space))
    out = forward(x, fused)
    out = jax.block_until_ready(out)

    assert out.shape == (batch, action_space)
    out_f32 = out.astype(jnp.float32)

    # Matched-precision reference (bf16 MXU operands, f32 accumulation).
    ref_bf16 = reference_forward(x, params, dot_dtype=jnp.bfloat16)
    assert jnp.allclose(out_f32, ref_bf16, atol=1e-2, rtol=1e-2), \
        "mismatch vs bf16-matched reference"

    # Full f32 reference (original PyTorch semantics).
    ref_f32 = reference_forward(x, params, dot_dtype=jnp.float32)
    assert jnp.allclose(out_f32, ref_f32, atol=5e-2, rtol=5e-2), \
        "mismatch vs f32 reference"

    print("KERNEL_OK")
</pallas_src>

<mosaic_0001>
module attributes {stable_mosaic.version = 11 : i64} {
  func.func @dueling_dqn_kernel(%arg0: i32, %arg1: memref<64x16xbf16, #tpu.memory_space<vmem>>, %arg2: memref<16x128xbf16, #tpu.memory_space<vmem>>, %arg3: memref<4x128x128xbf16, #tpu.memory_space<vmem>>, %arg4: memref<128x128xbf16, #tpu.memory_space<vmem>>, %arg5: memref<128x128xbf16, #tpu.memory_space<vmem>>, %arg6: memref<8x128xf32, #tpu.memory_space<vmem>>, %arg7: memref<64x128xbf16, #tpu.memory_space<vmem>>) attributes {dimension_semantics = [#tpu.dimension_semantics<parallel>], iteration_bounds = array<i64: 2>, scalar_prefetch = 0 : i64, scratch_operands = 0 : i64, tpu.core_type = #tpu.core_type<tc>, window_params = [{transform_indices = @transform_0, window_bounds = array<i64: 64, 16>}, {pipeline_mode = #tpu.pipeline_mode<synchronous>, transform_indices = @transform_1, window_bounds = array<i64: 16, 128>}, {pipeline_mode = #tpu.pipeline_mode<synchronous>, transform_indices = @transform_2, window_bounds = array<i64: 4, 128, 128>}, {pipeline_mode = #tpu.pipeline_mode<synchronous>, transform_indices = @transform_3, window_bounds = array<i64: 128, 128>}, {pipeline_mode = #tpu.pipeline_mode<synchronous>, transform_indices = @transform_4, window_bounds = array<i64: 128, 128>}, {pipeline_mode = #tpu.pipeline_mode<synchronous>, transform_indices = @transform_5, window_bounds = array<i64: 8, 128>}, {transform_indices = @transform_6, window_bounds = array<i64: 64, 128>}]} {
    %c0 = arith.constant 0 : index
    %c0_0 = arith.constant 0 : index
    %0 = vector.load %arg1[%c0, %c0_0] : memref<64x16xbf16, #tpu.memory_space<vmem>>, vector<64x16xbf16>
    %c0_1 = arith.constant 0 : index
    %c0_2 = arith.constant 0 : index
    %1 = vector.load %arg6[%c0_1, %c0_2] : memref<8x128xf32, #tpu.memory_space<vmem>>, vector<1x128xf32>
    %c1 = arith.constant 1 : index
    %c0_3 = arith.constant 0 : index
    %2 = vector.load %arg6[%c1, %c0_3] : memref<8x128xf32, #tpu.memory_space<vmem>>, vector<1x128xf32>
    %c2 = arith.constant 2 : index
    %c0_4 = arith.constant 0 : index
    %3 = vector.load %arg6[%c2, %c0_4] : memref<8x128xf32, #tpu.memory_space<vmem>>, vector<1x128xf32>
    %c3 = arith.constant 3 : index
    %c0_5 = arith.constant 0 : index
    %4 = vector.load %arg6[%c3, %c0_5] : memref<8x128xf32, #tpu.memory_space<vmem>>, vector<1x128xf32>
    %c4 = arith.constant 4 : index
    %c0_6 = arith.constant 0 : index
    %5 = vector.load %arg6[%c4, %c0_6] : memref<8x128xf32, #tpu.memory_space<vmem>>, vector<1x128xf32>
    %c0_7 = arith.constant 0 : index
    %c0_8 = arith.constant 0 : index
    %6 = vector.load %arg2[%c0_7, %c0_8] : memref<16x128xbf16, #tpu.memory_space<vmem>>, vector<16x128xbf16>
    %cst = arith.constant dense<0.000000e+00> : vector<64x128xf32>
    %7 = tpu.matmul %0, %6, %cst {dimension_numbers = #tpu.dot_dimension_numbers<[1], [0], [0], [1], [0, 0, 1, 1], [], []>} : vector<64x16xbf16>, vector<16x128xbf16>, vector<64x128xf32> -> vector<64x128xf32>
    %8 = vector.broadcast %1 : vector<1x128xf32> to vector<64x128xf32>
    %9 = arith.addf %7, %8 : vector<64x128xf32>
    %cst_9 = arith.constant 0.000000e+00 : f32
    %10 = vector.broadcast %cst_9 : f32 to vector<64x128xf32>
    %11 = arith.maximumf %9, %10 : vector<64x128xf32>
    %12 = arith.truncf %11 : vector<64x128xf32> to vector<64x128xbf16>
    %c0_10 = arith.constant 0 : index
    %c0_11 = arith.constant 0 : index
    %c0_12 = arith.constant 0 : index
    %13 = vector.load %arg3[%c0_10, %c0_11, %c0_12] : memref<4x128x128xbf16, #tpu.memory_space<vmem>>, vector<1x128x128xbf16>
    %14 = vector.shape_cast %13 : vector<1x128x128xbf16> to vector<128x128xbf16>
    %cst_13 = arith.constant dense<0.000000e+00> : vector<64x128xf32>
    %15 = tpu.matmul %12, %14, %cst_13 {dimension_numbers = #tpu.dot_dimension_numbers<[1], [0], [0], [1], [0, 0, 1, 1], [], []>} : vector<64x128xbf16>, vector<128x128xbf16>, vector<64x128xf32> -> vector<64x128xf32>
    %16 = vector.broadcast %2 : vector<1x128xf32> to vector<64x128xf32>
    %17 = arith.addf %15, %16 : vector<64x128xf32>
    %cst_14 = arith.constant 0.000000e+00 : f32
    %18 = vector.broadcast %cst_14 : f32 to vector<64x128xf32>
    %19 = arith.maximumf %17, %18 : vector<64x128xf32>
    %20 = arith.truncf %19 : vector<64x128xf32> to vector<64x128xbf16>
    %c1_15 = arith.constant 1 : index
    %c0_16 = arith.constant 0 : index
    %c0_17 = arith.constant 0 : index
    %21 = vector.load %arg3[%c1_15, %c0_16, %c0_17] : memref<4x128x128xbf16, #tpu.memory_space<vmem>>, vector<1x128x128xbf16>
    %22 = vector.shape_cast %21 : vector<1x128x128xbf16> to vector<128x128xbf16>
    %cst_18 = arith.constant dense<0.000000e+00> : vector<64x128xf32>
    %23 = tpu.matmul %20, %22, %cst_18 {dimension_numbers = #tpu.dot_dimension_numbers<[1], [0], [0], [1], [0, 0, 1, 1], [], []>} : vector<64x128xbf16>, vector<128x128xbf16>, vector<64x128xf32> -> vector<64x128xf32>
    %24 = arith.addf %11, %23 : vector<64x128xf32>
    %25 = arith.truncf %24 : vector<64x128xf32> to vector<64x128xbf16>
    %c2_19 = arith.constant 2 : index
    %c0_20 = arith.constant 0 : index
    %c0_21 = arith.constant 0 : index
    %26 = vector.load %arg3[%c2_19, %c0_20, %c0_21] : memref<4x128x128xbf16, #tpu.memory_space<vmem>>, vector<1x128x128xbf16>
    %27 = vector.shape_cast %26 : vector<1x128x128xbf16> to vector<128x128xbf16>
    %cst_22 = arith.constant dense<0.000000e+00> : vector<64x128xf32>
    %28 = tpu.matmul %25, %27, %cst_22 {dimension_numbers = #tpu.dot_dimension_numbers<[1], [0], [0], [1], [0, 0, 1, 1], [], []>} : vector<64x128xbf16>, vector<128x128xbf16>, vector<64x128xf32> -> vector<64x128xf32>
    %29 = vector.broadcast %3 : vector<1x128xf32> to vector<64x128xf32>
    %30 = arith.addf %28, %29 : vector<64x128xf32>
    %cst_23 = arith.constant 0.000000e+00 : f32
    %31 = vector.broadcast %cst_23 : f32 to vector<64x128xf32>
    %32 = arith.maximumf %30, %31 : vector<64x128xf32>
    %33 = arith.truncf %32 : vector<64x128xf32> to vector<64x128xbf16>
    %c3_24 = arith.constant 3 : index
    %c0_25 = arith.constant 0 : index
    %c0_26 = arith.constant 0 : index
    %34 = vector.load %arg3[%c3_24, %c0_25, %c0_26] : memref<4x128x128xbf16, #tpu.memory_space<vmem>>, vector<1x128x128xbf16>
    %35 = vector.shape_cast %34 : vector<1x128x128xbf16> to vector<128x128xbf16>
    %cst_27 = arith.constant dense<0.000000e+00> : vector<64x128xf32>
    %36 = tpu.matmul %33, %35, %cst_27 {dimension_numbers = #tpu.dot_dimension_numbers<[1], [0], [0], [1], [0, 0, 1, 1], [], []>} : vector<64x128xbf16>, vector<128x128xbf16>, vector<64x128xf32> -> vector<64x128xf32>
    %37 = arith.addf %24, %36 : vector<64x128xf32>
    %38 = arith.truncf %37 : vector<64x128xf32> to vector<64x128xbf16>
    %c0_28 = arith.constant 0 : index
    %c0_29 = arith.constant 0 : index
    %39 = vector.load %arg4[%c0_28, %c0_29] : memref<128x128xbf16, #tpu.memory_space<vmem>>, vector<128x128xbf16>
    %cst_30 = arith.constant dense<0.000000e+00> : vector<64x128xf32>
    %40 = tpu.matmul %38, %39, %cst_30 {dimension_numbers = #tpu.dot_dimension_numbers<[1], [0], [0], [1], [0, 0, 1, 1], [], []>} : vector<64x128xbf16>, vector<128x128xbf16>, vector<64x128xf32> -> vector<64x128xf32>
    %41 = vector.broadcast %4 : vector<1x128xf32> to vector<64x128xf32>
    %42 = arith.addf %40, %41 : vector<64x128xf32>
    %cst_31 = arith.constant 0.000000e+00 : f32
    %43 = vector.broadcast %cst_31 : f32 to vector<64x128xf32>
    %44 = arith.maximumf %42, %43 : vector<64x128xf32>
    %45 = arith.truncf %44 : vector<64x128xf32> to vector<64x128xbf16>
    %c0_32 = arith.constant 0 : index
    %c0_33 = arith.constant 0 : index
    %46 = vector.load %arg5[%c0_32, %c0_33] : memref<128x128xbf16, #tpu.memory_space<vmem>>, vector<128x128xbf16>
    %cst_34 = arith.constant dense<0.000000e+00> : vector<64x128xf32>
    %47 = tpu.matmul %45, %46, %cst_34 {dimension_numbers = #tpu.dot_dimension_numbers<[1], [0], [0], [1], [0, 0, 1, 1], [], []>} : vector<64x128xbf16>, vector<128x128xbf16>, vector<64x128xf32> -> vector<64x128xf32>
    %48 = vector.broadcast %5 : vector<1x128xf32> to vector<64x128xf32>
    %49 = arith.addf %47, %48 : vector<64x128xf32>
    %50 = arith.truncf %49 : vector<64x128xf32> to vector<64x128xbf16>
    %c0_35 = arith.constant 0 : index
    %c0_36 = arith.constant 0 : index
    %51 = vector.load %arg7[%c0_35, %c0_36] : memref<64x128xbf16, #tpu.memory_space<vmem>>, vector<64x128xbf16>
    tpu.vector_store %arg7[%c0_35, %c0_36], %50 {strides = array<i32>} : memref<64x128xbf16, #tpu.memory_space<vmem>>, vector<64x128xbf16>,
    return
  }
  func.func @transform_0(%arg0: i32) -> (i32, i32) {
    %c0_i32 = arith.constant 0 : i32
    %c0_i32_0 = arith.constant 0 : i32
    return %arg0, %c0_i32 : i32, i32
  }
  func.func @transform_1(%arg0: i32) -> (i32, i32) {
    %c0_i32 = arith.constant 0 : i32
    %c0_i32_0 = arith.constant 0 : i32
    %c0_i32_1 = arith.constant 0 : i32
    return %c0_i32, %c0_i32_0 : i32, i32
  }
  func.func @transform_2(%arg0: i32) -> (i32, i32, i32) {
    %c0_i32 = arith.constant 0 : i32
    %c0_i32_0 = arith.constant 0 : i32
    %c0_i32_1 = arith.constant 0 : i32
    %c0_i32_2 = arith.constant 0 : i32
    return %c0_i32, %c0_i32_0, %c0_i32_1 : i32, i32, i32
  }
  func.func @transform_3(%arg0: i32) -> (i32, i32) {
    %c0_i32 = arith.constant 0 : i32
    %c0_i32_0 = arith.constant 0 : i32
    %c0_i32_1 = arith.constant 0 : i32
    return %c0_i32, %c0_i32_0 : i32, i32
  }
  func.func @transform_4(%arg0: i32) -> (i32, i32) {
    %c0_i32 = arith.constant 0 : i32
    %c0_i32_0 = arith.constant 0 : i32
    %c0_i32_1 = arith.constant 0 : i32
    return %c0_i32, %c0_i32_0 : i32, i32
  }
  func.func @transform_5(%arg0: i32) -> (i32, i32) {
    %c0_i32 = arith.constant 0 : i32
    %c0_i32_0 = arith.constant 0 : i32
    %c0_i32_1 = arith.constant 0 : i32
    return %c0_i32, %c0_i32_0 : i32, i32
  }
  func.func @transform_6(%arg0: i32) -> (i32, i32) {
    %c0_i32 = arith.constant 0 : i32
    %c0_i32_0 = arith.constant 0 : i32
    return %arg0, %c0_i32 : i32, i32
  }
}

</mosaic_0001>

<llo_original>
// kernel: dueling_dqn_forward.1
$region0: #{dueling_dqn_forward.1}
  #allocation0 [shape = 'u32[]', space=smem, size = 0x4, offset = 0x4, fixed_abs, tag = 'smem constant byte address 0x4 - core index']
  #allocation1 [shape = 'u32[72,128]{1,0:T(1,128)}', space=vmem, size = 0x9000, scoped, tag = 'internal scratch']
  %s0 = inlined_call_operand.vmem [shape: bf16[128,16], index: 0, kind: input, shape index: {}]
  %s1 = inlined_call_operand.vmem [shape: bf16[16,128], index: 1, kind: input, shape index: {}]
  %s2 = inlined_call_operand.hbm [shape: bf16[4,128,128], index: 2, kind: input, shape index: {}]
  %s3 = inlined_call_operand.vmem [shape: bf16[128,128], index: 3, kind: input, shape index: {}]
  %s4 = inlined_call_operand.vmem [shape: bf16[128,128], index: 4, kind: input, shape index: {}]
  %s5 = inlined_call_operand.vmem [shape: f32[8,128], index: 5, kind: input, shape index: {}]
  %s6 = inlined_call_operand.vmem [shape: bf16[128,128], index: 6, kind: output, shape index: {}]
  %s7 = sld [smem:[#allocation0]]
  $region61: #{dueling_dqn_forward.1} parent=0
    _
  %s9 = ssub.s32 1, %s7
  %s10 = scalar_select 0, %s9, %s7
  $region1: #{dueling_dqn_forward.1} parent=0
    #allocation2 [shape = 'u8[131072]{0}', space=vmem, size = 0x20000, scoped, tag = 'input window, operand 2, single buffered']
    #allocation3 [shape = 's32[2]{0}', space=sflag, size = 0x8, scoped, tag = 'scoped memory for dueling_dqn_forward.1']
    %11 = vsyncpa [#allocation3], 0
    loop: start=0, step=1, limit=4
    $region2: #{dueling_dqn_forward.1} parent=1 // loop_pre_header
      _
    $region3: #{dueling_dqn_forward.1} parent=1 // loop_header
      %s13 = sphi 0, %s17
      %p14 = scmp.ge.s32.totalorder %s13, 4
      %s23 = sphi 0, %s25
      %s26 = sphi 0, %s23
      %s27 = sphi 0, %s26
      %s43 = sphi 0, %s27
      %s47 = sphi 0, %s47
      %s49 = sphi 0, %s47
      %s50 = sphi 0, %s49
      %s64 = sphi 0, %s50
      %s68 = sphi 0, %s68
      %s70 = sphi 0, %s68
      %s71 = sphi 0, %s70
      %s85 = sphi 0, %s71
      %s89 = sphi 0, %s89
      %s91 = sphi 0, %s89
      %s92 = sphi 0, %s91
      %s106 = sphi 0, %s92
      %s110 = sphi 0, %s110
      %s112 = sphi 0, %s110
      %s113 = sphi 0, %s112
      %s127 = sphi 0, %s113
      %s131 = sphi 0, %s131
      %s133 = sphi 0, %s131
      %s134 = sphi 0, %s133
      %s148 = sphi 0, %s134
      %s154 = sphi 0, %s156
      %s157 = sphi 0, %s154
      %s158 = sphi 0, %s157
      %s174 = sphi 0, %s158
    $region4: #{dueling_dqn_forward.1} parent=1 // loop_header_branch
      %16 = sbr.rel (%p14) target = $region8
    $region5: #{dueling_dqn_forward.1} parent=1 // loop_body
      %s18 = ssub.s32 %s13, 1
      %s19 = ssub.s32 %s13, 2
      %s20 = sadd.s32 %s13, 1
      %s21 = ssub.s32 %s13, %s20
      %p22 = scmp.eq.s32.totalorder %s21, 0
      %s24 = sadd.s32 %s23, 1
      %s25 = scalar_select %p22, %s23, %s24
      %p28 = pneg %p22
      %p29 = scmp.eq.s32.totalorder %s13, 1
      %p30 = por %p28, %p29
      %p31 = scmp.ne.s32.totalorder %s23, %s26
      %p32 = scmp.eq.s32.totalorder %s13, 0
      %p33 = por %p31, %p32
      %p34 = scmp.ne.s32.totalorder %s23, %s26
      %p35 = scmp.eq.s32.totalorder %s18, 1
      %p36 = por %p34, %p35
      %p37 = scmp.ne.s32.totalorder %s26, %s27
      %p38 = scmp.eq.s32.totalorder %s18, 0
      %p39 = por %p37, %p38
      %p40 = scmp.ne.s32.totalorder %s26, %s27
      %p41 = scmp.eq.s32.totalorder %s19, 1
      %p42 = por %p40, %p41
      %p44 = scmp.ne.s32.totalorder %s27, %s43
      %p45 = scmp.eq.s32.totalorder %s19, 0
      %p46 = por %p44, %p45
      %s48 = sadd.s32 %s47, 1
      %p51 = scmp.eq.s32.totalorder %s13, 1
      %p52 = scmp.ne.s32.totalorder %s47, %s49
      %p53 = scmp.eq.s32.totalorder %s13, 0
      %p54 = por %p52, %p53
      %p55 = scmp.ne.s32.totalorder %s47, %s49
      %p56 = scmp.eq.s32.totalorder %s18, 1
      %p57 = por %p55, %p56
      %p58 = scmp.ne.s32.totalorder %s49, %s50
      %p59 = scmp.eq.s32.totalorder %s18, 0
      %p60 = por %p58, %p59
      %p61 = scmp.ne.s32.totalorder %s49, %s50
      %p62 = scmp.eq.s32.totalorder %s19, 1
      %p63 = por %p61, %p62
      %p65 = scmp.ne.s32.totalorder %s50, %s64
      %p66 = scmp.eq.s32.totalorder %s19, 0
      %p67 = por %p65, %p66
      %s69 = sadd.s32 %s68, 1
      %p72 = scmp.eq.s32.totalorder %s13, 1
      %p73 = scmp.ne.s32.totalorder %s68, %s70
      %p74 = scmp.eq.s32.totalorder %s13, 0
      %p75 = por %p73, %p74
      %p76 = scmp.ne.s32.totalorder %s68, %s70
      %p77 = scmp.eq.s32.totalorder %s18, 1
      %p78 = por %p76, %p77
      %p79 = scmp.ne.s32.totalorder %s70, %s71
      %p80 = scmp.eq.s32.totalorder %s18, 0
      %p81 = por %p79, %p80
      %p82 = scmp.ne.s32.totalorder %s70, %s71
      %p83 = scmp.eq.s32.totalorder %s19, 1
      %p84 = por %p82, %p83
      %p86 = scmp.ne.s32.totalorder %s71, %s85
      %p87 = scmp.eq.s32.totalorder %s19, 0
      %p88 = por %p86, %p87
      %s90 = sadd.s32 %s89, 1
      %p93 = scmp.eq.s32.totalorder %s13, 1
      %p94 = scmp.ne.s32.totalorder %s89, %s91
      %p95 = scmp.eq.s32.totalorder %s13, 0
      %p96 = por %p94, %p95
      %p97 = scmp.ne.s32.totalorder %s89, %s91
      %p98 = scmp.eq.s32.totalorder %s18, 1
      %p99 = por %p97, %p98
      %p100 = scmp.ne.s32.totalorder %s91, %s92
      %p101 = scmp.eq.s32.totalorder %s18, 0
      %p102 = por %p100, %p101
      %p103 = scmp.ne.s32.totalorder %s91, %s92
      %p104 = scmp.eq.s32.totalorder %s19, 1
      %p105 = por %p103, %p104
      %p107 = scmp.ne.s32.totalorder %s92, %s106
      %p108 = scmp.eq.s32.totalorder %s19, 0
      %p109 = por %p107, %p108
      %s111 = sadd.s32 %s110, 1
      %p114 = scmp.eq.s32.totalorder %s13, 1
      %p115 = scmp.ne.s32.totalorder %s110, %s112
      %p116 = scmp.eq.s32.totalorder %s13, 0
      %p117 = por %p115, %p116
      %p118 = scmp.ne.s32.totalorder %s110, %s112
      %p119 = scmp.eq.s32.totalorder %s18, 1
      %p120 = por %p118, %p119
      %p121 = scmp.ne.s32.totalorder %s112, %s113
      %p122 = scmp.eq.s32.totalorder %s18, 0
      %p123 = por %p121, %p122
      %p124 = scmp.ne.s32.totalorder %s112, %s113
      %p125 = scmp.eq.s32.totalorder %s19, 1
      %p126 = por %p124, %p125
      %p128 = scmp.ne.s32.totalorder %s113, %s127
      %p129 = scmp.eq.s32.totalorder %s19, 0
      %p130 = por %p128, %p129
      %s132 = sadd.s32 %s131, 1
      %p135 = scmp.eq.s32.totalorder %s13, 1
      %p136 = scmp.ne.s32.totalorder %s131, %s133
      %p137 = scmp.eq.s32.totalorder %s13, 0
      %p138 = por %p136, %p137
      %p139 = scmp.ne.s32.totalorder %s131, %s133
      %p140 = scmp.eq.s32.totalorder %s18, 1
      %p141 = por %p139, %p140
      %p142 = scmp.ne.s32.totalorder %s133, %s134
      %p143 = scmp.eq.s32.totalorder %s18, 0
      %p144 = por %p142, %p143
      %p145 = scmp.ne.s32.totalorder %s133, %s134
      %p146 = scmp.eq.s32.totalorder %s19, 1
      %p147 = por %p145, %p146
      %p149 = scmp.ne.s32.totalorder %s134, %s148
      %p150 = scmp.eq.s32.totalorder %s19, 0
      %p151 = por %p149, %p150
      %s152 = ssub.s32 %s13, %s20
      %p153 = scmp.eq.s32.totalorder %s152, 0
      %s155 = sadd.s32 %s154, 1
      %s156 = scalar_select %p153, %s154, %s155
      %p159 = pneg %p153
      %p160 = scmp.eq.s32.totalorder %s13, 1
      %p161 = por %p159, %p160
      %p162 = scmp.ne.s32.totalorder %s154, %s157
      %p163 = scmp.eq.s32.totalorder %s13, 0
      %p164 = por %p162, %p163
      %p165 = scmp.ne.s32.totalorder %s154, %s157
      %p166 = scmp.eq.s32.totalorder %s18, 1
      %p167 = por %p165, %p166
      %p168 = scmp.ne.s32.totalorder %s157, %s158
      %p169 = scmp.eq.s32.totalorder %s18, 0
      %p170 = por %p168, %p169
      %p171 = scmp.ne.s32.totalorder %s157, %s158
      %p172 = scmp.eq.s32.totalorder %s19, 1
      %p173 = por %p171, %p172
      %p175 = scmp.ne.s32.totalorder %s158, %s174
      %p176 = scmp.eq.s32.totalorder %s19, 0
      %p177 = por %p175, %p176
      %p178 = scmp.le.s32.totalorder 1, %s13
      %p179 = scmp.lt.s32.totalorder %s13, 3
      %p180 = pnand %p178, %p179
      %p181 = pneg %p180
      // Predicated region
      $region9: #{dueling_dqn_forward.1} parent=5 // pred_check
        _
      $region10: #{dueling_dqn_forward.1} parent=5 // pred_check_branch
        %183 = sbr.rel (%p180) target = $region12
      $region11: #{dueling_dqn_forward.1} parent=5 // pred_region
        %s184 = ssub.s32 %s13, 1
        // Predicated region
        $region13: #{dueling_dqn_forward.1} parent=11 // pred_check
          %p185 = pneg %p60
        $region14: #{dueling_dqn_forward.1} parent=11 // pred_check_branch
          %187 = sbr.rel (%p185) target = $region16
        $region15: #{dueling_dqn_forward.1} parent=11 // pred_region
          _
        $region16: #{dueling_dqn_forward.1} parent=11 // pred_fallthru
          _
        // Predicated region
        $region17: #{dueling_dqn_forward.1} parent=11 // pred_check
          %p188 = pneg %p81
        $region18: #{dueling_dqn_forward.1} parent=11 // pred_check_branch
          %190 = sbr.rel (%p188) target = $region20
        $region19: #{dueling_dqn_forward.1} parent=11 // pred_region
          %192 = vsyncadd [#allocation3], 0
          %s193 = sshll.u32 %s2, 4
          %s194 = int_to_ptr.hbm [resolvable:$true] %s193
          %s195 = sshll.u32 [#allocation2], 4
          %s196 = int_to_ptr.vmem [resolvable:$true] %s195
          %201 = dma.hbm_to_vmem [thread:$0]  %s194, 4096, %s196, [#allocation3], 64, 64, 4
        $region20: #{dueling_dqn_forward.1} parent=11 // pred_fallthru
          _
        // Predicated region
        $region21: #{dueling_dqn_forward.1} parent=11 // pred_check
          %p202 = pneg %p102
        $region22: #{dueling_dqn_forward.1} parent=11 // pred_check_branch
          %204 = sbr.rel (%p202) target = $region24
        $region23: #{dueling_dqn_forward.1} parent=11 // pred_region
          _
        $region24: #{dueling_dqn_forward.1} parent=11 // pred_fallthru
          _
        // Predicated region
        $region25: #{dueling_dqn_forward.1} parent=11 // pred_check
          %p205 = pneg %p123
        $region26: #{dueling_dqn_forward.1} parent=11 // pred_check_branch
          %207 = sbr.rel (%p205) target = $region28
        $region27: #{dueling_dqn_forward.1} parent=11 // pred_region
          _
        $region28: #{dueling_dqn_forward.1} parent=11 // pred_fallthru
          _
        // Predicated region
        $region29: #{dueling_dqn_forward.1} parent=11 // pred_check
          %p208 = pneg %p144
        $region30: #{dueling_dqn_forward.1} parent=11 // pred_check_branch
          %210 = sbr.rel (%p208) target = $region32
        $region31: #{dueling_dqn_forward.1} parent=11 // pred_region
          _
        $region32: #{dueling_dqn_forward.1} parent=11 // pred_fallthru
          _
      $region12: #{dueling_dqn_forward.1} parent=5 // pred_fallthru
        _
      %p211 = scmp.lt.s32.totalorder %s13, 2
      // Predicated region
      $region33: #{dueling_dqn_forward.1} parent=5 // pred_check
        %p212 = pneg %p211
      $region34: #{dueling_dqn_forward.1} parent=5 // pred_check_branch
        %214 = sbr.rel (%p212) target = $region36
      $region35: #{dueling_dqn_forward.1} parent=5 // pred_region
        // Predicated region
        $region37: #{dueling_dqn_forward.1} parent=35 // pred_check
          %p215 = pneg %p33
        $region38: #{dueling_dqn_forward.1} parent=35 // pred_check_branch
          %217 = sbr.rel (%p215) target = $region40
        $region39: #{dueling_dqn_forward.1} parent=35 // pred_region
          %s218 = smul.u32 8, %s13
          %p219 = scmp.lt.s32.totalorder %s218, 15
          %s220 = scalar_select %p219, %s218, 15
          %s221 = smul.addr %s220, 4
          %s222 = scalar_lea.vmem %s0, %s221
          %s223 = smul.u32 8, %s13
        $region40: #{dueling_dqn_forward.1} parent=35 // pred_fallthru
          _
      $region36: #{dueling_dqn_forward.1} parent=5 // pred_fallthru
        _
      %p224 = scmp.le.s32.totalorder 1, %s13
      %p225 = scmp.lt.s32.totalorder %s13, 3
      %p226 = pnand %p224, %p225
      %p227 = pneg %p226
      // Predicated region
      $region41: #{dueling_dqn_forward.1} parent=5 // pred_check
        _
      $region42: #{dueling_dqn_forward.1} parent=5 // pred_check_branch
        %229 = sbr.rel (%p226) target = $region44
      $region43: #{dueling_dqn_forward.1} parent=5 // pred_region
        %s230 = ssub.s32 %s13, 1
        // Predicated region
        $region45: #{dueling_dqn_forward.1} parent=43 // pred_check
          %p231 = pneg %p81
        $region46: #{dueling_dqn_forward.1} parent=43 // pred_check_branch
          %233 = sbr.rel (%p231) target = $region48
        $region47: #{dueling_dqn_forward.1} parent=43 // pred_region
          %235 = dma.done [#allocation3], 4096
        $region48: #{dueling_dqn_forward.1} parent=43 // pred_fallthru
          _
        %s236 = smul.u32 8, %s18
        %p237 = scmp.lt.s32.totalorder %s236, 15
        %s238 = scalar_select %p237, %s236, 15
        %s239 = smul.addr %s238, 4
        %s240 = scalar_lea.vmem %s0, %s239
        %p241 = pneg %p39
        %p242 = pneg %p36
        %p243 = pneg %p60
        %p244 = pneg %p57
        %p245 = pneg %p81
        %p246 = pneg %p78
        %p247 = pneg %p102
        %p248 = pneg %p99
        %p249 = pneg %p123
        %p250 = pneg %p120
        %p251 = pneg %p144
        %p252 = pneg %p141
        %p253 = pneg %p170
        %p254 = pneg %p167
        %s255 = smul.u32 8, %s18
        %p256 = scmp.lt.s32.totalorder %s255, 15
        %s257 = scalar_select %p256, %s255, 15
        %s258 = smul.addr %s257, 4
        %s259 = scalar_lea.vmem %s6, %s258
        %s260 = smul.u32 8, %s18
        %p261 = scmp.lt.s32.totalorder %s260, 15
        %s262 = scalar_select %p261, %s260, 15
        %s263 = smul.addr %s262, 4
        %s264 = scalar_lea.vmem %s0, %s263
        %s265 = smul.u32 8, %s18
        %s266 = smul.u32 8, %s18
        %p267 = scmp.lt.s32.totalorder %s266, 15
        %s268 = scalar_select %p267, %s266, 15
        %s269 = smul.addr %s268, 4
        %s270 = scalar_lea.vmem %s6, %s269
        %s271 = smul.u32 8, %s18
        %v273 = vld [vmem:[%s264] sm:$0xf]
        %v274 = vld [vmem:[%s264 + $0x4] sm:$0xf]
        %v275 = vld [vmem:[%s264 + $0x8] sm:$0xf]
        %v276 = vld [vmem:[%s264 + $0xc] sm:$0xf]
        %v277 = vld [vmem:[%s264 + $0x10] sm:$0xf]
        %v278 = vld [vmem:[%s264 + $0x14] sm:$0xf]
        %v279 = vld [vmem:[%s264 + $0x18] sm:$0xf]
        %v280 = vld [vmem:[%s264 + $0x1c] sm:$0xf]
        %v281 = vld [vmem:[%s5] sm:$0x1]
        %v282 = vld [vmem:[%s5 + $0x1] sm:$0x1]
        %v283 = vld [vmem:[%s5 + $0x2] sm:$0x1]
        %v284 = vld [vmem:[%s5 + $0x3] sm:$0x1]
        %v285 = vld [vmem:[%s5 + $0x4] sm:$0x1]
        %v286 = vld [vmem:[%s1] sm:$0xf]
        %v287 = vld [vmem:[%s1 + $0x4] sm:$0xf]
        %v288 = vperm.slane %v281, 0
        %v297 = vunpack.c.l.b16 %v273
        %v298 = vunpack.c.l.b16 %v274
        %v299 = vunpack.c.l.b16 %v275
        %v300 = vunpack.c.l.b16 %v276
        %v301 = vunpack.c.l.b16 %v277
        %v302 = vunpack.c.l.b16 %v278
        %v303 = vunpack.c.l.b16 %v279
        %v304 = vunpack.c.l.b16 %v280
        %v305 = vpack.c.b16 %v298, %v297
        %v306 = vpack.c.b16 %v300, %v299
        %v307 = vpack.c.b16 %v302, %v301
        %v308 = vpack.c.b16 %v304, %v303
        %v311 = vunpack.c.l.b16 %v286
        %v312 = vunpack.c.l.b16 %v287
        %v313 = vpack.c.b16 %v312, %v311
        %vm315 = vcmask 130048
        %v317 = vsel %vm315, %v305, 0
        %v320 = vsel %vm315, %v306, 0
        %v323 = vsel %vm315, %v307, 0
        %v326 = vsel %vm315, %v308, 0
        %328 = vmatpush.bf16.msra.mxu0 0
        %329 = vmatpush.bf16.msra.mxu0 0
        %330 = vmatpush.bf16.msra.mxu0 0
        %331 = vmatpush.bf16.msra.mxu0 0
        %332 = vmatpush.bf16.msra.mxu0 0
        %333 = vmatpush.bf16.msra.mxu0 0
        %334 = vmatpush.bf16.msra.mxu0 0
        %335 = vmatpush.bf16.msra.mxu0 %v313
        %336 = vmatmul.bf16.gmra.mxu0 %v317
        %v337 = vpop.f32.mrf.mxu0
        %v338 = vadd.f32 %v288, %v337
        %v339 = vpop.f32.mrf.mxu0
        %v340 = vadd.f32 %v288, %v339
        %341 = vmatmul.bf16.gmra.mxu0 %v320
        %v342 = vpop.f32.mrf.mxu0
        %v343 = vadd.f32 %v288, %v342
        %v344 = vpop.f32.mrf.mxu0
        %v345 = vadd.f32 %v288, %v344
        %346 = vmatmul.bf16.gmra.mxu0 %v323
        %v347 = vpop.f32.mrf.mxu0
        %v348 = vadd.f32 %v288, %v347
        %v349 = vpop.f32.mrf.mxu0
        %v350 = vadd.f32 %v288, %v349
        %351 = vmatmul.bf16.gmra.mxu0 %v326
        %v352 = vpop.f32.mrf.mxu0
        %v353 = vadd.f32 %v288, %v352
        %v354 = vpop.f32.mrf.mxu0
        %v355 = vadd.f32 %v288, %v354
        %356 = vdwg.mxu0
        %v357 = vmax.f32 %v338, 0.0
        %v358 = vmax.f32 %v340, 0.0
        %v359 = vmax.f32 %v343, 0.0
        %v360 = vmax.f32 %v345, 0.0
        %v361 = vmax.f32 %v348, 0.0
        %v362 = vmax.f32 %v350, 0.0
        %v363 = vmax.f32 %v353, 0.0
        %v364 = vmax.f32 %v355, 0.0
        %v365 = vpack.c.bf16 %v358, %v357
        %v366 = vpack.c.bf16 %v360, %v359
        %v367 = vpack.c.bf16 %v362, %v361
        %v368 = vpack.c.bf16 %v364, %v363
        %v369 = vld [vmem:[#allocation2] sm:$0xf]
        %v370 = vld [vmem:[#allocation2 + $0x4] sm:$0xf]
        %v371 = vld [vmem:[#allocation2 + $0x8] sm:$0xf]
        %v372 = vld [vmem:[#allocation2 + $0xc] sm:$0xf]
        %v373 = vld [vmem:[#allocation2 + $0x10] sm:$0xf]
        %v374 = vld [vmem:[#allocation2 + $0x14] sm:$0xf]
        %v375 = vld [vmem:[#allocation2 + $0x18] sm:$0xf]
        %v376 = vld [vmem:[#allocation2 + $0x1c] sm:$0xf]
        %v377 = vld [vmem:[#allocation2 + $0x20] sm:$0xf]
        %v378 = vld [vmem:[#allocation2 + $0x24] sm:$0xf]
        %v379 = vld [vmem:[#allocation2 + $0x28] sm:$0xf]
        %v380 = vld [vmem:[#allocation2 + $0x2c] sm:$0xf]
        %v381 = vld [vmem:[#allocation2 + $0x30] sm:$0xf]
        %v382 = vld [vmem:[#allocation2 + $0x34] sm:$0xf]
        %v383 = vld [vmem:[#allocation2 + $0x38] sm:$0xf]
        %v384 = vld [vmem:[#allocation2 + $0x3c] sm:$0xf]
        %v385 = vperm.slane %v282, 0
        %v402 = vunpack.c.l.b16 %v369
        %v403 = vunpack.c.l.b16 %v370
        %v404 = vunpack.c.l.b16 %v371
        %v405 = vunpack.c.l.b16 %v372
        %v406 = vunpack.c.l.b16 %v373
        %v407 = vunpack.c.l.b16 %v374
        %v408 = vunpack.c.l.b16 %v375
        %v409 = vunpack.c.l.b16 %v376
        %v410 = vunpack.c.l.b16 %v377
        %v411 = vunpack.c.l.b16 %v378
        %v412 = vunpack.c.l.b16 %v379
        %v413 = vunpack.c.l.b16 %v380
        %v414 = vunpack.c.l.b16 %v381
        %v415 = vunpack.c.l.b16 %v382
        %v416 = vunpack.c.l.b16 %v383
        %v417 = vunpack.c.l.b16 %v384
        %v418 = vpack.c.b16 %v403, %v402
        %v419 = vpack.c.b16 %v405, %v404
        %v420 = vpack.c.b16 %v407, %v406
        %v421 = vpack.c.b16 %v409, %v408
        %v422 = vpack.c.b16 %v411, %v410
        %v423 = vpack.c.b16 %v413, %v412
        %v424 = vpack.c.b16 %v415, %v414
        %v425 = vpack.c.b16 %v417, %v416
        %434 = vmatpush.bf16.msra.mxu0 %v425
        %435 = vmatpush.bf16.msra.mxu0 %v424
        %436 = vmatpush.bf16.msra.mxu0 %v423
        %437 = vmatpush.bf16.msra.mxu0 %v422
        %438 = vmatpush.bf16.msra.mxu0 %v421
        %439 = vmatpush.bf16.msra.mxu0 %v420
        %440 = vmatpush.bf16.msra.mxu0 %v419
        %441 = vmatpush.bf16.msra.mxu0 %v418
        %442 = vmatmul.bf16.gmra.mxu0 %v365
        %v443 = vpop.f32.mrf.mxu0
        %v444 = vadd.f32 %v385, %v443
        %v445 = vpop.f32.mrf.mxu0
        %v446 = vadd.f32 %v385, %v445
        %447 = vmatmul.bf16.gmra.mxu0 %v366
        %v448 = vpop.f32.mrf.mxu0
        %v449 = vadd.f32 %v385, %v448
        %v450 = vpop.f32.mrf.mxu0
        %v451 = vadd.f32 %v385, %v450
        %452 = vmatmul.bf16.gmra.mxu0 %v367
        %v453 = vpop.f32.mrf.mxu0
        %v454 = vadd.f32 %v385, %v453
        %v455 = vpop.f32.mrf.mxu0
        %v456 = vadd.f32 %v385, %v455
        %457 = vmatmul.bf16.gmra.mxu0 %v368
        %v458 = vpop.f32.mrf.mxu0
        %v459 = vadd.f32 %v385, %v458
        %v460 = vpop.f32.mrf.mxu0
        %v461 = vadd.f32 %v385, %v460
        %462 = vdwg.mxu0
        %v463 = vmax.f32 %v444, 0.0
        %v464 = vmax.f32 %v446, 0.0
        %v465 = vmax.f32 %v449, 0.0
        %v466 = vmax.f32 %v451, 0.0
        %v467 = vmax.f32 %v454, 0.0
        %v468 = vmax.f32 %v456, 0.0
        %v469 = vmax.f32 %v459, 0.0
        %v470 = vmax.f32 %v461, 0.0
        %v471 = vpack.c.bf16 %v464, %v463
        %v472 = vpack.c.bf16 %v466, %v465
        %v473 = vpack.c.bf16 %v468, %v467
        %v474 = vpack.c.bf16 %v470, %v469
        %s475 = scalar_lea.vmem [#allocation2], 64
        %v476 = vld [vmem:[%s475] sm:$0xf]
        %v477 = vld [vmem:[%s475 + $0x4] sm:$0xf]
        %v478 = vld [vmem:[%s475 + $0x8] sm:$0xf]
        %v479 = vld [vmem:[%s475 + $0xc] sm:$0xf]
        %v480 = vld [vmem:[%s475 + $0x10] sm:$0xf]
        %v481 = vld [vmem:[%s475 + $0x14] sm:$0xf]
        %v482 = vld [vmem:[%s475 + $0x18] sm:$0xf]
        %v483 = vld [vmem:[%s475 + $0x1c] sm:$0xf]
        %v484 = vld [vmem:[%s475 + $0x20] sm:$0xf]
        %v485 = vld [vmem:[%s475 + $0x24] sm:$0xf]
        %v486 = vld [vmem:[%s475 + $0x28] sm:$0xf]
        %v487 = vld [vmem:[%s475 + $0x2c] sm:$0xf]
        %v488 = vld [vmem:[%s475 + $0x30] sm:$0xf]
        %v489 = vld [vmem:[%s475 + $0x34] sm:$0xf]
        %v490 = vld [vmem:[%s475 + $0x38] sm:$0xf]
        %v491 = vld [vmem:[%s475 + $0x3c] sm:$0xf]
        %v508 = vunpack.c.l.b16 %v476
        %v509 = vunpack.c.l.b16 %v477
        %v510 = vunpack.c.l.b16 %v478
        %v511 = vunpack.c.l.b16 %v479
        %v512 = vunpack.c.l.b16 %v480
        %v513 = vunpack.c.l.b16 %v481
        %v514 = vunpack.c.l.b16 %v482
        %v515 = vunpack.c.l.b16 %v483
        %v516 = vunpack.c.l.b16 %v484
        %v517 = vunpack.c.l.b16 %v485
        %v518 = vunpack.c.l.b16 %v486
        %v519 = vunpack.c.l.b16 %v487
        %v520 = vunpack.c.l.b16 %v488
        %v521 = vunpack.c.l.b16 %v489
        %v522 = vunpack.c.l.b16 %v490
        %v523 = vunpack.c.l.b16 %v491
        %v524 = vpack.c.b16 %v509, %v508
        %v525 = vpack.c.b16 %v511, %v510
        %v526 = vpack.c.b16 %v513, %v512
        %v527 = vpack.c.b16 %v515, %v514
        %v528 = vpack.c.b16 %v517, %v516
        %v529 = vpack.c.b16 %v519, %v518
        %v530 = vpack.c.b16 %v521, %v520
        %v531 = vpack.c.b16 %v523, %v522
        %540 = vmatpush.bf16.msra.mxu0 %v531
        %541 = vmatpush.bf16.msra.mxu0 %v530
        %542 = vmatpush.bf16.msra.mxu0 %v529
        %543 = vmatpush.bf16.msra.mxu0 %v528
        %544 = vmatpush.bf16.msra.mxu0 %v527
        %545 = vmatpush.bf16.msra.mxu0 %v526
        %546 = vmatpush.bf16.msra.mxu0 %v525
        %547 = vmatpush.bf16.msra.mxu0 %v524
        %548 = vmatmul.bf16.gmra.mxu0 %v471
        %v549 = vpop.f32.mrf.mxu0
        %v550 = vadd.f32 0.0, %v549
        %v551 = vpop.f32.mrf.mxu0
        %v552 = vadd.f32 0.0, %v551
        %553 = vmatmul.bf16.gmra.mxu0 %v472
        %v554 = vpop.f32.mrf.mxu0
        %v555 = vadd.f32 0.0, %v554
        %v556 = vpop.f32.mrf.mxu0
        %v557 = vadd.f32 0.0, %v556
        %558 = vmatmul.bf16.gmra.mxu0 %v473
        %v559 = vpop.f32.mrf.mxu0
        %v560 = vadd.f32 0.0, %v559
        %v561 = vpop.f32.mrf.mxu0
        %v562 = vadd.f32 0.0, %v561
        %563 = vmatmul.bf16.gmra.mxu0 %v474
        %v564 = vpop.f32.mrf.mxu0
        %v565 = vadd.f32 0.0, %v564
        %v566 = vpop.f32.mrf.mxu0
        %v567 = vadd.f32 0.0, %v566
        %568 = vdwg.mxu0
        %v569 = vadd.f32 %v357, %v550
        %v570 = vadd.f32 %v358, %v552
        %v571 = vadd.f32 %v359, %v555
        %v572 = vadd.f32 %v360, %v557
        %v573 = vadd.f32 %v361, %v560
        %v574 = vadd.f32 %v362, %v562
        %v575 = vadd.f32 %v363, %v565
        %v576 = vadd.f32 %v364, %v567
        %v577 = vpack.c.bf16 %v570, %v569
        %v578 = vpack.c.bf16 %v572, %v571
        %v579 = vpack.c.bf16 %v574, %v573
        %v580 = vpack.c.bf16 %v576, %v575
        %s581 = scalar_lea.vmem [#allocation2], 128
        %v582 = vld [vmem:[%s581] sm:$0xf]
        %v583 = vld [vmem:[%s581 + $0x4] sm:$0xf]
        %v584 = vld [vmem:[%s581 + $0x8] sm:$0xf]
        %v585 = vld [vmem:[%s581 + $0xc] sm:$0xf]
        %v586 = vld [vmem:[%s581 + $0x10] sm:$0xf]
        %v587 = vld [vmem:[%s581 + $0x14] sm:$0xf]
        %v588 = vld [vmem:[%s581 + $0x18] sm:$0xf]
        %v589 = vld [vmem:[%s581 + $0x1c] sm:$0xf]
        %v590 = vld [vmem:[%s581 + $0x20] sm:$0xf]
        %v591 = vld [vmem:[%s581 + $0x24] sm:$0xf]
        %v592 = vld [vmem:[%s581 + $0x28] sm:$0xf]
        %v593 = vld [vmem:[%s581 + $0x2c] sm:$0xf]
        %v594 = vld [vmem:[%s581 + $0x30] sm:$0xf]
        %v595 = vld [vmem:[%s581 + $0x34] sm:$0xf]
        %v596 = vld [vmem:[%s581 + $0x38] sm:$0xf]
        %v597 = vld [vmem:[%s581 + $0x3c] sm:$0xf]
        %v598 = vperm.slane %v283, 0
        %v615 = vunpack.c.l.b16 %v582
        %v616 = vunpack.c.l.b16 %v583
        %v617 = vunpack.c.l.b16 %v584
        %v618 = vunpack.c.l.b16 %v585
        %v619 = vunpack.c.l.b16 %v586
        %v620 = vunpack.c.l.b16 %v587
        %v621 = vunpack.c.l.b16 %v588
        %v622 = vunpack.c.l.b16 %v589
        %v623 = vunpack.c.l.b16 %v590
        %v624 = vunpack.c.l.b16 %v591
        %v625 = vunpack.c.l.b16 %v592
        %v626 = vunpack.c.l.b16 %v593
        %v627 = vunpack.c.l.b16 %v594
        %v628 = vunpack.c.l.b16 %v595
        %v629 = vunpack.c.l.b16 %v596
        %v630 = vunpack.c.l.b16 %v597
        %v631 = vpack.c.b16 %v616, %v615
        %v632 = vpack.c.b16 %v618, %v617
        %v633 = vpack.c.b16 %v620, %v619
        %v634 = vpack.c.b16 %v622, %v621
        %v635 = vpack.c.b16 %v624, %v623
        %v636 = vpack.c.b16 %v626, %v625
        %v637 = vpack.c.b16 %v628, %v627
        %v638 = vpack.c.b16 %v630, %v629
        %647 = vmatpush.bf16.msra.mxu0 %v638
        %648 = vmatpush.bf16.msra.mxu0 %v637
        %649 = vmatpush.bf16.msra.mxu0 %v636
        %650 = vmatpush.bf16.msra.mxu0 %v635
        %651 = vmatpush.bf16.msra.mxu0 %v634
        %652 = vmatpush.bf16.msra.mxu0 %v633
        %653 = vmatpush.bf16.msra.mxu0 %v632
        %654 = vmatpush.bf16.msra.mxu0 %v631
        %655 = vmatmul.bf16.gmra.mxu0 %v577
        %v656 = vpop.f32.mrf.mxu0
        %v657 = vadd.f32 %v598, %v656
        %v658 = vpop.f32.mrf.mxu0
        %v659 = vadd.f32 %v598, %v658
        %660 = vmatmul.bf16.gmra.mxu0 %v578
        %v661 = vpop.f32.mrf.mxu0
        %v662 = vadd.f32 %v598, %v661
        %v663 = vpop.f32.mrf.mxu0
        %v664 = vadd.f32 %v598, %v663
        %665 = vmatmul.bf16.gmra.mxu0 %v579
        %v666 = vpop.f32.mrf.mxu0
        %v667 = vadd.f32 %v598, %v666
        %v668 = vpop.f32.mrf.mxu0
        %v669 = vadd.f32 %v598, %v668
        %670 = vmatmul.bf16.gmra.mxu0 %v580
        %v671 = vpop.f32.mrf.mxu0
        %v672 = vadd.f32 %v598, %v671
        %v673 = vpop.f32.mrf.mxu0
        %v674 = vadd.f32 %v598, %v673
        %675 = vdwg.mxu0
        %v676 = vmax.f32 %v657, 0.0
        %v677 = vmax.f32 %v659, 0.0
        %v678 = vmax.f32 %v662, 0.0
        %v679 = vmax.f32 %v664, 0.0
        %v680 = vmax.f32 %v667, 0.0
        %v681 = vmax.f32 %v669, 0.0
        %v682 = vmax.f32 %v672, 0.0
        %v683 = vmax.f32 %v674, 0.0
        %v684 = vpack.c.bf16 %v677, %v676
        %v685 = vpack.c.bf16 %v679, %v678
        %v686 = vpack.c.bf16 %v681, %v680
        %v687 = vpack.c.bf16 %v683, %v682
        %s688 = scalar_lea.vmem [#allocation2], 192
        %v689 = vld [vmem:[%s688] sm:$0xf]
        %v690 = vld [vmem:[%s688 + $0x4] sm:$0xf]
        %v691 = vld [vmem:[%s688 + $0x8] sm:$0xf]
        %v692 = vld [vmem:[%s688 + $0xc] sm:$0xf]
        %v693 = vld [vmem:[%s688 + $0x10] sm:$0xf]
        %v694 = vld [vmem:[%s688 + $0x14] sm:$0xf]
        %v695 = vld [vmem:[%s688 + $0x18] sm:$0xf]
        %v696 = vld [vmem:[%s688 + $0x1c] sm:$0xf]
        %v697 = vld [vmem:[%s688 + $0x20] sm:$0xf]
        %v698 = vld [vmem:[%s688 + $0x24] sm:$0xf]
        %v699 = vld [vmem:[%s688 + $0x28] sm:$0xf]
        %v700 = vld [vmem:[%s688 + $0x2c] sm:$0xf]
        %v701 = vld [vmem:[%s688 + $0x30] sm:$0xf]
        %v702 = vld [vmem:[%s688 + $0x34] sm:$0xf]
        %v703 = vld [vmem:[%s688 + $0x38] sm:$0xf]
        %v704 = vld [vmem:[%s688 + $0x3c] sm:$0xf]
        %v721 = vunpack.c.l.b16 %v689
        %v722 = vunpack.c.l.b16 %v690
        %v723 = vunpack.c.l.b16 %v691
        %v724 = vunpack.c.l.b16 %v692
        %v725 = vunpack.c.l.b16 %v693
        %v726 = vunpack.c.l.b16 %v694
        %v727 = vunpack.c.l.b16 %v695
        %v728 = vunpack.c.l.b16 %v696
        %v729 = vunpack.c.l.b16 %v697
        %v730 = vunpack.c.l.b16 %v698
        %v731 = vunpack.c.l.b16 %v699
        %v732 = vunpack.c.l.b16 %v700
        %v733 = vunpack.c.l.b16 %v701
        %v734 = vunpack.c.l.b16 %v702
        %v735 = vunpack.c.l.b16 %v703
        %v736 = vunpack.c.l.b16 %v704
        %v737 = vpack.c.b16 %v722, %v721
        %v738 = vpack.c.b16 %v724, %v723
        %v739 = vpack.c.b16 %v726, %v725
        %v740 = vpack.c.b16 %v728, %v727
        %v741 = vpack.c.b16 %v730, %v729
        %v742 = vpack.c.b16 %v732, %v731
        %v743 = vpack.c.b16 %v734, %v733
        %v744 = vpack.c.b16 %v736, %v735
        %753 = vmatpush.bf16.msra.mxu0 %v744
        %754 = vmatpush.bf16.msra.mxu0 %v743
        %755 = vmatpush.bf16.msra.mxu0 %v742
        %756 = vmatpush.bf16.msra.mxu0 %v741
        %757 = vmatpush.bf16.msra.mxu0 %v740
        %758 = vmatpush.bf16.msra.mxu0 %v739
        %759 = vmatpush.bf16.msra.mxu0 %v738
        %760 = vmatpush.bf16.msra.mxu0 %v737
        %761 = vmatmul.bf16.gmra.mxu0 %v684
        %v762 = vpop.f32.mrf.mxu0
        %v763 = vadd.f32 0.0, %v762
        %v764 = vpop.f32.mrf.mxu0
        %v765 = vadd.f32 0.0, %v764
        %766 = vmatmul.bf16.gmra.mxu0 %v685
        %v767 = vpop.f32.mrf.mxu0
        %v768 = vadd.f32 0.0, %v767
        %v769 = vpop.f32.mrf.mxu0
        %v770 = vadd.f32 0.0, %v769
        %771 = vmatmul.bf16.gmra.mxu0 %v686
        %v772 = vpop.f32.mrf.mxu0
        %v773 = vadd.f32 0.0, %v772
        %v774 = vpop.f32.mrf.mxu0
        %v775 = vadd.f32 0.0, %v774
        %776 = vmatmul.bf16.gmra.mxu0 %v687
        %v777 = vpop.f32.mrf.mxu0
        %v778 = vadd.f32 0.0, %v777
        %v779 = vpop.f32.mrf.mxu0
        %v780 = vadd.f32 0.0, %v779
        %781 = vdwg.mxu0
        %v782 = vadd.f32 %v569, %v763
        %v783 = vadd.f32 %v570, %v765
        %v784 = vadd.f32 %v571, %v768
        %v785 = vadd.f32 %v572, %v770
        %v786 = vadd.f32 %v573, %v773
        %v787 = vadd.f32 %v574, %v775
        %v788 = vadd.f32 %v575, %v778
        %v789 = vadd.f32 %v576, %v780
        %v790 = vpack.c.bf16 %v783, %v782
        %v791 = vpack.c.bf16 %v785, %v784
        %v792 = vpack.c.bf16 %v787, %v786
        %v793 = vpack.c.bf16 %v789, %v788
        %v794 = vld [vmem:[%s3] sm:$0xf]
        %v795 = vld [vmem:[%s3 + $0x4] sm:$0xf]
        %v796 = vld [vmem:[%s3 + $0x8] sm:$0xf]
        %v797 = vld [vmem:[%s3 + $0xc] sm:$0xf]
        %v798 = vld [vmem:[%s3 + $0x10] sm:$0xf]
        %v799 = vld [vmem:[%s3 + $0x14] sm:$0xf]
        %v800 = vld [vmem:[%s3 + $0x18] sm:$0xf]
        %v801 = vld [vmem:[%s3 + $0x1c] sm:$0xf]
        %v802 = vld [vmem:[%s3 + $0x20] sm:$0xf]
        %v803 = vld [vmem:[%s3 + $0x24] sm:$0xf]
        %v804 = vld [vmem:[%s3 + $0x28] sm:$0xf]
        %v805 = vld [vmem:[%s3 + $0x2c] sm:$0xf]
        %v806 = vld [vmem:[%s3 + $0x30] sm:$0xf]
        %v807 = vld [vmem:[%s3 + $0x34] sm:$0xf]
        %v808 = vld [vmem:[%s3 + $0x38] sm:$0xf]
        %v809 = vld [vmem:[%s3 + $0x3c] sm:$0xf]
        %v810 = vperm.slane %v284, 0
        %v827 = vunpack.c.l.b16 %v794
        %v828 = vunpack.c.l.b16 %v795
        %v829 = vunpack.c.l.b16 %v796
        %v830 = vunpack.c.l.b16 %v797
        %v831 = vunpack.c.l.b16 %v798
        %v832 = vunpack.c.l.b16 %v799
        %v833 = vunpack.c.l.b16 %v800
        %v834 = vunpack.c.l.b16 %v801
        %v835 = vunpack.c.l.b16 %v802
        %v836 = vunpack.c.l.b16 %v803
        %v837 = vunpack.c.l.b16 %v804
        %v838 = vunpack.c.l.b16 %v805
        %v839 = vunpack.c.l.b16 %v806
        %v840 = vunpack.c.l.b16 %v807
        %v841 = vunpack.c.l.b16 %v808
        %v842 = vunpack.c.l.b16 %v809
        %v843 = vpack.c.b16 %v828, %v827
        %v844 = vpack.c.b16 %v830, %v829
        %v845 = vpack.c.b16 %v832, %v831
        %v846 = vpack.c.b16 %v834, %v833
        %v847 = vpack.c.b16 %v836, %v835
        %v848 = vpack.c.b16 %v838, %v837
        %v849 = vpack.c.b16 %v840, %v839
        %v850 = vpack.c.b16 %v842, %v841
        %859 = vmatpush.bf16.msra.mxu0 %v850
        %860 = vmatpush.bf16.msra.mxu0 %v849
        %861 = vmatpush.bf16.msra.mxu0 %v848
        %862 = vmatpush.bf16.msra.mxu0 %v847
        %863 = vmatpush.bf16.msra.mxu0 %v846
        %864 = vmatpush.bf16.msra.mxu0 %v845
        %865 = vmatpush.bf16.msra.mxu0 %v844
        %866 = vmatpush.bf16.msra.mxu0 %v843
        %867 = vmatmul.bf16.gmra.mxu0 %v790
        %v868 = vpop.f32.mrf.mxu0
        %v869 = vadd.f32 %v810, %v868
        %v870 = vpop.f32.mrf.mxu0
        %v871 = vadd.f32 %v810, %v870
        %872 = vmatmul.bf16.gmra.mxu0 %v791
        %v873 = vpop.f32.mrf.mxu0
        %v874 = vadd.f32 %v810, %v873
        %v875 = vpop.f32.mrf.mxu0
        %v876 = vadd.f32 %v810, %v875
        %877 = vmatmul.bf16.gmra.mxu0 %v792
        %v878 = vpop.f32.mrf.mxu0
        %v879 = vadd.f32 %v810, %v878
        %v880 = vpop.f32.mrf.mxu0
        %v881 = vadd.f32 %v810, %v880
        %882 = vmatmul.bf16.gmra.mxu0 %v793
        %v883 = vpop.f32.mrf.mxu0
        %v884 = vadd.f32 %v810, %v883
        %v885 = vpop.f32.mrf.mxu0
        %v886 = vadd.f32 %v810, %v885
        %887 = vdwg.mxu0
        %v888 = vmax.f32 %v869, 0.0
        %v889 = vmax.f32 %v871, 0.0
        %v890 = vmax.f32 %v874, 0.0
        %v891 = vmax.f32 %v876, 0.0
        %v892 = vmax.f32 %v879, 0.0
        %v893 = vmax.f32 %v881, 0.0
        %v894 = vmax.f32 %v884, 0.0
        %v895 = vmax.f32 %v886, 0.0
        %v896 = vpack.c.bf16 %v889, %v888
        %v897 = vpack.c.bf16 %v891, %v890
        %v898 = vpack.c.bf16 %v893, %v892
        %v899 = vpack.c.bf16 %v895, %v894
        %v900 = vld [vmem:[%s4] sm:$0xf]
        %v901 = vld [vmem:[%s4 + $0x4] sm:$0xf]
        %v902 = vld [vmem:[%s4 + $0x8] sm:$0xf]
        %v903 = vld [vmem:[%s4 + $0xc] sm:$0xf]
        %v904 = vld [vmem:[%s4 + $0x10] sm:$0xf]
        %v905 = vld [vmem:[%s4 + $0x14] sm:$0xf]
        %v906 = vld [vmem:[%s4 + $0x18] sm:$0xf]
        %v907 = vld [vmem:[%s4 + $0x1c] sm:$0xf]
        %v908 = vld [vmem:[%s4 + $0x20] sm:$0xf]
        %v909 = vld [vmem:[%s4 + $0x24] sm:$0xf]
        %v910 = vld [vmem:[%s4 + $0x28] sm:$0xf]
        %v911 = vld [vmem:[%s4 + $0x2c] sm:$0xf]
        %v912 = vld [vmem:[%s4 + $0x30] sm:$0xf]
        %v913 = vld [vmem:[%s4 + $0x34] sm:$0xf]
        %v914 = vld [vmem:[%s4 + $0x38] sm:$0xf]
        %v915 = vld [vmem:[%s4 + $0x3c] sm:$0xf]
        %v916 = vperm.slane %v285, 0
        %v933 = vunpack.c.l.b16 %v900
        %v934 = vunpack.c.l.b16 %v901
        %v935 = vunpack.c.l.b16 %v902
        %v936 = vunpack.c.l.b16 %v903
        %v937 = vunpack.c.l.b16 %v904
        %v938 = vunpack.c.l.b16 %v905
        %v939 = vunpack.c.l.b16 %v906
        %v940 = vunpack.c.l.b16 %v907
        %v941 = vunpack.c.l.b16 %v908
        %v942 = vunpack.c.l.b16 %v909
        %v943 = vunpack.c.l.b16 %v910
        %v944 = vunpack.c.l.b16 %v911
        %v945 = vunpack.c.l.b16 %v912
        %v946 = vunpack.c.l.b16 %v913
        %v947 = vunpack.c.l.b16 %v914
        %v948 = vunpack.c.l.b16 %v915
        %v949 = vpack.c.b16 %v934, %v933
        %v950 = vpack.c.b16 %v936, %v935
        %v951 = vpack.c.b16 %v938, %v937
        %v952 = vpack.c.b16 %v940, %v939
        %v953 = vpack.c.b16 %v942, %v941
        %v954 = vpack.c.b16 %v944, %v943
        %v955 = vpack.c.b16 %v946, %v945
        %v956 = vpack.c.b16 %v948, %v947
        %965 = vmatpush.bf16.msra.mxu0 %v956
        %966 = vmatpush.bf16.msra.mxu0 %v955
        %967 = vmatpush.bf16.msra.mxu0 %v954
        %968 = vmatpush.bf16.msra.mxu0 %v953
        %969 = vmatpush.bf16.msra.mxu0 %v952
        %970 = vmatpush.bf16.msra.mxu0 %v951
        %971 = vmatpush.bf16.msra.mxu0 %v950
        %972 = vmatpush.bf16.msra.mxu0 %v949
        %973 = vmatmul.bf16.gmra.mxu0 %v896
        %v974 = vpop.f32.mrf.mxu0
        %v975 = vadd.f32 %v916, %v974
        %v976 = vpop.f32.mrf.mxu0
        %v977 = vadd.f32 %v916, %v976
        %978 = vmatmul.bf16.gmra.mxu0 %v897
        %v979 = vpop.f32.mrf.mxu0
        %v980 = vadd.f32 %v916, %v979
        %v981 = vpop.f32.mrf.mxu0
        %v982 = vadd.f32 %v916, %v981
        %983 = vmatmul.bf16.gmra.mxu0 %v898
        %v984 = vpop.f32.mrf.mxu0
        %v985 = vadd.f32 %v916, %v984
        %v986 = vpop.f32.mrf.mxu0
        %v987 = vadd.f32 %v916, %v986
        %988 = vmatmul.bf16.gmra.mxu0 %v899
        %v989 = vpop.f32.mrf.mxu0
        %v990 = vadd.f32 %v916, %v989
        %v991 = vpop.f32.mrf.mxu0
        %v992 = vadd.f32 %v916, %v991
        %993 = vdwg.mxu0
        %v994 = vpack.c.bf16 %v975, %v975
        %v995 = vpack.c.bf16 %v977, %v977
        %v996 = vpack.c.bf16 %v980, %v980
        %v997 = vpack.c.bf16 %v982, %v982
        %v998 = vpack.c.bf16 %v985, %v985
        %v999 = vpack.c.bf16 %v987, %v987
        %v1000 = vpack.c.bf16 %v990, %v990
        %v1001 = vpack.c.bf16 %v992, %v992
        %1002 = vst [vmem:[%s270] sm:$0xf] %v994
        %1003 = vst [vmem:[%s270 + $0x4] sm:$0xf] %v995
        %1004 = vst [vmem:[%s270 + $0x8] sm:$0xf] %v996
        %1005 = vst [vmem:[%s270 + $0xc] sm:$0xf] %v997
        %1006 = vst [vmem:[%s270 + $0x10] sm:$0xf] %v998
        %1007 = vst [vmem:[%s270 + $0x14] sm:$0xf] %v999
        %1008 = vst [vmem:[%s270 + $0x18] sm:$0xf] %v1000
        %1009 = vst [vmem:[%s270 + $0x1c] sm:$0xf] %v1001
        %s1010 = smul.u32 8, %s18
        %p1011 = scmp.lt.s32.totalorder %s1010, 15
        %s1012 = scalar_select %p1011, %s1010, 15
        %s1013 = smul.addr %s1012, 4
        %s1014 = scalar_lea.vmem %s6, %s1013
        // Predicated region
        $region49: #{dueling_dqn_forward.1} parent=43 // pred_check
          %p1015 = pneg %p167
        $region50: #{dueling_dqn_forward.1} parent=43 // pred_check_branch
          %1017 = sbr.rel (%p1015) target = $region52
        $region51: #{dueling_dqn_forward.1} parent=43 // pred_region
          %s1018 = smul.u32 8, %s18
        $region52: #{dueling_dqn_forward.1} parent=43 // pred_fallthru
          _
      $region44: #{dueling_dqn_forward.1} parent=5 // pred_fallthru
        _
      %p1019 = scmp.le.s32.totalorder 2, %s13
      // Predicated region
      $region53: #{dueling_dqn_forward.1} parent=5 // pred_check
        %p1020 = pneg %p1019
      $region54: #{dueling_dqn_forward.1} parent=5 // pred_check_branch
        %1022 = sbr.rel (%p1020) target = $region56
      $region55: #{dueling_dqn_forward.1} parent=5 // pred_region
        %s1023 = ssub.s32 %s13, 2
        // Predicated region
        $region57: #{dueling_dqn_forward.1} parent=55 // pred_check
          %p1024 = pneg %p173
        $region58: #{dueling_dqn_forward.1} parent=55 // pred_check_branch
          %1026 = sbr.rel (%p1024) target = $region60
        $region59: #{dueling_dqn_forward.1} parent=55 // pred_region
          %s1027 = smul.u32 8, %s19
          %p1028 = scmp.lt.s32.totalorder %s1027, 15
          %s1029 = scalar_select %p1028, %s1027, 15
          %s1030 = smul.addr %s1029, 4
          %s1031 = scalar_lea.vmem %s6, %s1030
        $region60: #{dueling_dqn_forward.1} parent=55 // pred_fallthru
          _
      $region56: #{dueling_dqn_forward.1} parent=5 // pred_fallthru
        _
    $region6: #{dueling_dqn_forward.1} parent=1 // loop_footer
      %s17 = sadd.s32 1, %s13
    $region7: #{dueling_dqn_forward.1} parent=1 // loop_footer_branch
      %12 = sbr.rel target = $region3
    $region8: #{dueling_dqn_forward.1} parent=1 // loop_exit
      _
    %1032 = vsyncpa [#allocation3], 1
    %s1033 = scalar_lea.sflag [#allocation3], 1
    %1034 = vsyncpa %s1033, 1

</llo_original>
